<compile_context>
chip_gen: v6e
topology: v6e:2x2x1
jax: 0.10.0
libtpu: 0.0.40
codegen_flags: <defaults>
</compile_context>

<pallas_src>
import functools

import jax
import jax.numpy as jnp
from jax.experimental import pallas as pl
from jax.experimental.pallas import tpu as pltpu

RATIO = 0.25
NUM_CLASSES = 5
_INF_BITS = 0x7F800000  # f32 +inf bit pattern: upper bound of the bit search


def _round_up(x, m):
    return ((x + m - 1) // m) * m


def _cdiv(a, b):
    return (a + b - 1) // b


def _ohem_kernel(pred_ref, tgt_ref, out_ref, ce_scratch, *, n, k, c, tile_r):
    pid = pl.program_id(0)
    tgt = tgt_ref[...]                                   # (tile_r, 128) int32

    # ---- per-sample cross entropy on dense (tile_r, 128) tiles ----
    # classes unrolled; re-index pred_ref per class so few slabs stay live.
    m = pred_ref[0]
    for i in range(1, c):
        m = jnp.maximum(m, pred_ref[i])
    denom = jnp.zeros_like(m)
    sh_t = jnp.zeros_like(m)
    for i in range(c):
        sh = pred_ref[i] - m
        denom = denom + jnp.exp(sh)
        sh_t = sh_t + jnp.where(tgt == i, sh, 0.0)       # one-hot gather
    ce = jnp.log(denom) - sh_t                           # (tile_r, 128)
    # CE is mathematically >= 0; clamp tiny negative rounding so the
    # f32-bit-pattern ordering used below stays exact.
    ce = jnp.maximum(ce, 0.0)

    # padded samples -> negative sentinel (never counted / selected)
    row = jax.lax.broadcasted_iota(jnp.int32, (tile_r, 128), 0)
    lane = jax.lax.broadcasted_iota(jnp.int32, (tile_r, 128), 1)
    sample = (pid * tile_r + row) * 128 + lane
    ce = jnp.where(sample < n, ce, -1.0)

    off = pl.multiple_of(pid * tile_r, tile_r)
    ce_scratch[pl.ds(off, tile_r), :] = ce               # dense aligned store

    # ---- epilogue: exact k-th-value threshold selection + mean ----
    @pl.when(pid == pl.num_programs(0) - 1)
    def _():
        # Binary search over f32 bit patterns for the k-th largest ce.
        # For ce >= 0 the int32 bit pattern is monotone in the value; padded
        # lanes (-1.0) have a negative bit pattern and never count.
        def body(_, carry):
            lo, hi = carry
            mid = lo + jnp.right_shift(hi - lo, 1)
            bits = pltpu.bitcast(ce_scratch[...], jnp.int32)
            cnt = jnp.sum(jnp.where(bits >= mid, 1.0, 0.0), keepdims=True)
            ge = cnt >= float(k)
            return jnp.where(ge, mid, lo), jnp.where(ge, hi, mid)

        lo0 = jnp.zeros((1, 1), jnp.int32)
        hi0 = jnp.full((1, 1), _INF_BITS, dtype=jnp.int32)
        lo, _unused = jax.lax.fori_loop(0, 32, body, (lo0, hi0))

        ce_all = ce_scratch[...]
        bits = pltpu.bitcast(ce_all, jnp.int32)
        gt = bits > lo                                    # strictly above thr
        sum_gt = jnp.sum(jnp.where(gt, ce_all, 0.0), keepdims=True)
        cnt_gt = jnp.sum(jnp.where(gt, 1.0, 0.0), keepdims=True)
        thr = jnp.max(jnp.where(bits == lo, ce_all, -1.0), keepdims=True)
        total = sum_gt + (float(k) - cnt_gt) * thr        # tie-exact top-k sum
        out_ref[...] = total * (1.0 / float(k))


def ohem_loss(pred, target, *, ratio=RATIO, max_rows_per_step=128):
    """pred: (N, C) float32 logits; target: (N,) int class ids -> scalar f32."""
    n, c = pred.shape
    k = max(1, int(n * ratio))

    # samples as (rows, 128): sublane- and lane-dense
    r = _cdiv(n, 128)
    if r <= max_rows_per_step:
        tile_r = max(r, 1)                       # single step, full-extent block
    else:
        n_tiles = _cdiv(r, max_rows_per_step)    # padding-aware tile choice
        tile_r = _round_up(_cdiv(r, n_tiles), 8)
    r_pad = _round_up(r, tile_r)
    n_pad = r_pad * 128
    grid = (r_pad // tile_r,)

    # TODO(synk): the producer should emit the (C, rows, 128) layout directly;
    # the (N, C) interface forces this wrapper-side transpose/pad copy.
    pred_t = jnp.transpose(pred).astype(jnp.float32)          # (C, N)
    tgt = target.astype(jnp.int32)
    if n_pad != n:
        pred_t = jnp.pad(pred_t, ((0, 0), (0, n_pad - n)))
        tgt = jnp.pad(tgt, (0, n_pad - n))
    pred_r = pred_t.reshape(c, r_pad, 128)
    tgt_r = tgt.reshape(r_pad, 128)

    kernel = functools.partial(_ohem_kernel, n=n, k=k, c=c, tile_r=tile_r)

    out = pl.pallas_call(
        kernel,
        out_shape=jax.ShapeDtypeStruct((1, 1), jnp.float32),
        grid_spec=pltpu.PrefetchScalarGridSpec(
            num_scalar_prefetch=0,
            grid=grid,
            in_specs=[
                pl.BlockSpec((c, tile_r, 128), lambda i: (0, i, 0)),
                pl.BlockSpec((tile_r, 128), lambda i: (i, 0)),
            ],
            out_specs=pl.BlockSpec((1, 1), lambda i: (0, 0)),
            scratch_shapes=[pltpu.VMEM((r_pad, 128), jnp.float32)],
        ),
        compiler_params=pltpu.CompilerParams(
            dimension_semantics=("arbitrary",)),
    )(pred_r, tgt_r)
    return out[0, 0]


if __name__ == "__main__":
    key = jax.random.PRNGKey(0)
    k1, k2, k3, k4 = jax.random.split(key, 4)

    def ref_loss(pred, target, ratio=RATIO):
        logp = jax.nn.log_softmax(pred, axis=1)
        ce = -jnp.take_along_axis(logp, target[:, None], axis=1)[:, 0]
        num_hard = max(1, int(pred.shape[0] * ratio))
        return jnp.mean(jax.lax.top_k(ce, num_hard)[0])

    # small case matching the module defaults (batch=8, num_classes=5)
    N, C = 8, NUM_CLASSES
    pred = jax.random.normal(k1, (N, C), dtype=jnp.float32)
    target = jax.random.randint(k2, (N,), 0, C, dtype=jnp.int32)
    loss = ohem_loss(pred, target)
    jax.block_until_ready(loss)
    ref = ref_loss(pred, target)
    assert jnp.allclose(loss, ref, atol=1e-5, rtol=1e-5), (loss, ref)

    # non-multiple-of-128 batch exercises the remainder-masking path
    N2 = 300
    pred2 = jax.random.normal(k3, (N2, C), dtype=jnp.float32)
    target2 = jax.random.randint(k4, (N2,), 0, C, dtype=jnp.int32)
    loss2 = ohem_loss(pred2, target2)
    jax.block_until_ready(loss2)
    ref2 = ref_loss(pred2, target2)
    assert jnp.allclose(loss2, ref2, atol=1e-5, rtol=1e-5), (loss2, ref2)

    print("KERNEL_OK")
</pallas_src>

<mosaic_0001>
module attributes {stable_mosaic.version = 11 : i64} {
  func.func @_ohem_kernel(%arg0: i32, %arg1: memref<5x1x128xf32, #tpu.memory_space<vmem>>, %arg2: memref<1x128xi32, #tpu.memory_space<vmem>>, %arg3: memref<1x1xf32, #tpu.memory_space<vmem>>, %arg4: memref<1x128xf32, #tpu.memory_space<vmem>>) attributes {dimension_semantics = [#tpu.dimension_semantics<arbitrary>], iteration_bounds = array<i64: 1>, scalar_prefetch = 0 : i64, scratch_operands = 1 : i64, tpu.core_type = #tpu.core_type<tc>, window_params = [{transform_indices = @transform_0, window_bounds = array<i64: 5, 1, 128>}, {transform_indices = @transform_1, window_bounds = array<i64: 1, 128>}, {pipeline_mode = #tpu.pipeline_mode<synchronous>, transform_indices = @transform_2, window_bounds = array<i64: 1, 1>}]} {
    %c0 = arith.constant 0 : index
    %c0_0 = arith.constant 0 : index
    %0 = vector.load %arg2[%c0, %c0_0] : memref<1x128xi32, #tpu.memory_space<vmem>>, vector<1x128xi32>
    %c0_1 = arith.constant 0 : index
    %c0_2 = arith.constant 0 : index
    %c0_3 = arith.constant 0 : index
    %1 = vector.load %arg1[%c0_1, %c0_2, %c0_3] : memref<5x1x128xf32, #tpu.memory_space<vmem>>, vector<1x1x128xf32>
    %2 = vector.shape_cast %1 : vector<1x1x128xf32> to vector<1x128xf32>
    %c1 = arith.constant 1 : index
    %c0_4 = arith.constant 0 : index
    %c0_5 = arith.constant 0 : index
    %3 = vector.load %arg1[%c1, %c0_4, %c0_5] : memref<5x1x128xf32, #tpu.memory_space<vmem>>, vector<1x1x128xf32>
    %4 = vector.shape_cast %3 : vector<1x1x128xf32> to vector<1x128xf32>
    %5 = arith.maximumf %2, %4 : vector<1x128xf32>
    %c2 = arith.constant 2 : index
    %c0_6 = arith.constant 0 : index
    %c0_7 = arith.constant 0 : index
    %6 = vector.load %arg1[%c2, %c0_6, %c0_7] : memref<5x1x128xf32, #tpu.memory_space<vmem>>, vector<1x1x128xf32>
    %7 = vector.shape_cast %6 : vector<1x1x128xf32> to vector<1x128xf32>
    %8 = arith.maximumf %5, %7 : vector<1x128xf32>
    %c3 = arith.constant 3 : index
    %c0_8 = arith.constant 0 : index
    %c0_9 = arith.constant 0 : index
    %9 = vector.load %arg1[%c3, %c0_8, %c0_9] : memref<5x1x128xf32, #tpu.memory_space<vmem>>, vector<1x1x128xf32>
    %10 = vector.shape_cast %9 : vector<1x1x128xf32> to vector<1x128xf32>
    %11 = arith.maximumf %8, %10 : vector<1x128xf32>
    %c4 = arith.constant 4 : index
    %c0_10 = arith.constant 0 : index
    %c0_11 = arith.constant 0 : index
    %12 = vector.load %arg1[%c4, %c0_10, %c0_11] : memref<5x1x128xf32, #tpu.memory_space<vmem>>, vector<1x1x128xf32>
    %13 = vector.shape_cast %12 : vector<1x1x128xf32> to vector<1x128xf32>
    %14 = arith.maximumf %11, %13 : vector<1x128xf32>
    %cst = arith.constant 0.000000e+00 : f32
    %15 = vector.broadcast %cst : f32 to vector<1x128xf32>
    %cst_12 = arith.constant 0.000000e+00 : f32
    %16 = vector.broadcast %cst_12 : f32 to vector<1x128xf32>
    %c0_13 = arith.constant 0 : index
    %c0_14 = arith.constant 0 : index
    %c0_15 = arith.constant 0 : index
    %17 = vector.load %arg1[%c0_13, %c0_14, %c0_15] : memref<5x1x128xf32, #tpu.memory_space<vmem>>, vector<1x1x128xf32>
    %18 = vector.shape_cast %17 : vector<1x1x128xf32> to vector<1x128xf32>
    %19 = arith.subf %18, %14 : vector<1x128xf32>
    %20 = math.exp %19 : vector<1x128xf32>
    %21 = arith.addf %15, %20 : vector<1x128xf32>
    %c0_i32 = arith.constant 0 : i32
    %22 = vector.broadcast %c0_i32 : i32 to vector<1x128xi32>
    %23 = arith.cmpi eq, %0, %22 : vector<1x128xi32>
    %cst_16 = arith.constant 0.000000e+00 : f32
    %24 = vector.broadcast %cst_16 : f32 to vector<1x128xf32>
    %25 = arith.select %23, %19, %24 : vector<1x128xi1>, vector<1x128xf32>
    %26 = arith.addf %16, %25 : vector<1x128xf32>
    %c1_17 = arith.constant 1 : index
    %c0_18 = arith.constant 0 : index
    %c0_19 = arith.constant 0 : index
    %27 = vector.load %arg1[%c1_17, %c0_18, %c0_19] : memref<5x1x128xf32, #tpu.memory_space<vmem>>, vector<1x1x128xf32>
    %28 = vector.shape_cast %27 : vector<1x1x128xf32> to vector<1x128xf32>
    %29 = arith.subf %28, %14 : vector<1x128xf32>
    %30 = math.exp %29 : vector<1x128xf32>
    %31 = arith.addf %21, %30 : vector<1x128xf32>
    %c1_i32 = arith.constant 1 : i32
    %32 = vector.broadcast %c1_i32 : i32 to vector<1x128xi32>
    %33 = arith.cmpi eq, %0, %32 : vector<1x128xi32>
    %cst_20 = arith.constant 0.000000e+00 : f32
    %34 = vector.broadcast %cst_20 : f32 to vector<1x128xf32>
    %35 = arith.select %33, %29, %34 : vector<1x128xi1>, vector<1x128xf32>
    %36 = arith.addf %26, %35 : vector<1x128xf32>
    %c2_21 = arith.constant 2 : index
    %c0_22 = arith.constant 0 : index
    %c0_23 = arith.constant 0 : index
    %37 = vector.load %arg1[%c2_21, %c0_22, %c0_23] : memref<5x1x128xf32, #tpu.memory_space<vmem>>, vector<1x1x128xf32>
    %38 = vector.shape_cast %37 : vector<1x1x128xf32> to vector<1x128xf32>
    %39 = arith.subf %38, %14 : vector<1x128xf32>
    %40 = math.exp %39 : vector<1x128xf32>
    %41 = arith.addf %31, %40 : vector<1x128xf32>
    %c2_i32 = arith.constant 2 : i32
    %42 = vector.broadcast %c2_i32 : i32 to vector<1x128xi32>
    %43 = arith.cmpi eq, %0, %42 : vector<1x128xi32>
    %cst_24 = arith.constant 0.000000e+00 : f32
    %44 = vector.broadcast %cst_24 : f32 to vector<1x128xf32>
    %45 = arith.select %43, %39, %44 : vector<1x128xi1>, vector<1x128xf32>
    %46 = arith.addf %36, %45 : vector<1x128xf32>
    %c3_25 = arith.constant 3 : index
    %c0_26 = arith.constant 0 : index
    %c0_27 = arith.constant 0 : index
    %47 = vector.load %arg1[%c3_25, %c0_26, %c0_27] : memref<5x1x128xf32, #tpu.memory_space<vmem>>, vector<1x1x128xf32>
    %48 = vector.shape_cast %47 : vector<1x1x128xf32> to vector<1x128xf32>
    %49 = arith.subf %48, %14 : vector<1x128xf32>
    %50 = math.exp %49 : vector<1x128xf32>
    %51 = arith.addf %41, %50 : vector<1x128xf32>
    %c3_i32 = arith.constant 3 : i32
    %52 = vector.broadcast %c3_i32 : i32 to vector<1x128xi32>
    %53 = arith.cmpi eq, %0, %52 : vector<1x128xi32>
    %cst_28 = arith.constant 0.000000e+00 : f32
    %54 = vector.broadcast %cst_28 : f32 to vector<1x128xf32>
    %55 = arith.select %53, %49, %54 : vector<1x128xi1>, vector<1x128xf32>
    %56 = arith.addf %46, %55 : vector<1x128xf32>
    %c4_29 = arith.constant 4 : index
    %c0_30 = arith.constant 0 : index
    %c0_31 = arith.constant 0 : index
    %57 = vector.load %arg1[%c4_29, %c0_30, %c0_31] : memref<5x1x128xf32, #tpu.memory_space<vmem>>, vector<1x1x128xf32>
    %58 = vector.shape_cast %57 : vector<1x1x128xf32> to vector<1x128xf32>
    %59 = arith.subf %58, %14 : vector<1x128xf32>
    %60 = math.exp %59 : vector<1x128xf32>
    %61 = arith.addf %51, %60 : vector<1x128xf32>
    %c4_i32 = arith.constant 4 : i32
    %62 = vector.broadcast %c4_i32 : i32 to vector<1x128xi32>
    %63 = arith.cmpi eq, %0, %62 : vector<1x128xi32>
    %cst_32 = arith.constant 0.000000e+00 : f32
    %64 = vector.broadcast %cst_32 : f32 to vector<1x128xf32>
    %65 = arith.select %63, %59, %64 : vector<1x128xi1>, vector<1x128xf32>
    %66 = arith.addf %56, %65 : vector<1x128xf32>
    %67 = math.log %61 : vector<1x128xf32>
    %68 = arith.subf %67, %66 : vector<1x128xf32>
    %cst_33 = arith.constant 0.000000e+00 : f32
    %69 = vector.broadcast %cst_33 : f32 to vector<1x128xf32>
    %70 = arith.maximumf %68, %69 : vector<1x128xf32>
    %71 = tpu.iota {dimensions = array<i32: 0>} : vector<1x128xi32>
    %72 = tpu.iota {dimensions = array<i32: 1>} : vector<1x128xi32>
    %c1_i32_34 = arith.constant 1 : i32
    %73 = arith.muli %arg0, %c1_i32_34 : i32
    %74 = vector.broadcast %73 : i32 to vector<1x128xi32>
    %75 = arith.addi %74, %71 : vector<1x128xi32>
    %c128_i32 = arith.constant 128 : i32
    %76 = vector.broadcast %c128_i32 : i32 to vector<1x128xi32>
    %77 = arith.muli %75, %76 : vector<1x128xi32>
    %78 = arith.addi %77, %72 : vector<1x128xi32>
    %c8_i32 = arith.constant 8 : i32
    %79 = vector.broadcast %c8_i32 : i32 to vector<1x128xi32>
    %80 = arith.cmpi slt, %78, %79 : vector<1x128xi32>
    %cst_35 = arith.constant -1.000000e+00 : f32
    %81 = vector.broadcast %cst_35 : f32 to vector<1x128xf32>
    %82 = arith.select %80, %70, %81 : vector<1x128xi1>, vector<1x128xf32>
    %c1_i32_36 = arith.constant 1 : i32
    %83 = arith.muli %arg0, %c1_i32_36 : i32
    %84 = tpu.assume_multiple %83, 1 : i32
    %85 = arith.index_cast %84 : i32 to index
    %c0_37 = arith.constant 0 : index
    %86 = vector.load %arg4[%85, %c0_37] : memref<1x128xf32, #tpu.memory_space<vmem>>, vector<1x128xf32>
    tpu.vector_store %arg4[%85, %c0_37], %82 {strides = array<i32>} : memref<1x128xf32, #tpu.memory_space<vmem>>, vector<1x128xf32>,
    %c0_i32_38 = arith.constant 0 : i32
    %87 = arith.cmpi eq, %arg0, %c0_i32_38 : i32
    %88 = arith.extui %87 : i1 to i32
    %c0_i32_39 = arith.constant 0 : i32
    %89 = arith.cmpi ne, %88, %c0_i32_39 : i32
    scf.if %89 {
      %c0_i32_40 = arith.constant 0 : i32
      %90 = vector.broadcast %c0_i32_40 : i32 to vector<1x1xi32>
      %c2139095040_i32 = arith.constant 2139095040 : i32
      %91 = vector.broadcast %c2139095040_i32 : i32 to vector<1x1xi32>
      %c0_i32_41 = arith.constant 0 : i32
      %c32_i32 = arith.constant 32 : i32
      %92 = arith.addi %c0_i32_41, %c32_i32 : i32
      %c1_i32_42 = arith.constant 1 : i32
      %93:2 = scf.for %arg5 = %c0_i32_41 to %92 step %c1_i32_42 iter_args(%arg6 = %90, %arg7 = %91) -> (vector<1x1xi32>, vector<1x1xi32>)  : i32 {
        %129 = arith.subi %arg7, %arg6 : vector<1x1xi32>
        %c1_i32_56 = arith.constant 1 : i32
        %130 = vector.broadcast %c1_i32_56 : i32 to vector<1x1xi32>
        %131 = arith.shrsi %129, %130 : vector<1x1xi32>
        %132 = arith.addi %arg6, %131 : vector<1x1xi32>
        %c0_57 = arith.constant 0 : index
        %c0_58 = arith.constant 0 : index
        %133 = vector.load %arg4[%c0_57, %c0_58] : memref<1x128xf32, #tpu.memory_space<vmem>>, vector<1x128xf32>
        %134 = tpu.bitcast %133 : vector<1x128xf32> -> vector<1x128xi32>
        %135 = vector.broadcast %132 : vector<1x1xi32> to vector<1x128xi32>
        %136 = arith.cmpi sge, %134, %135 : vector<1x128xi32>
        %cst_59 = arith.constant 1.000000e+00 : f32
        %cst_60 = arith.constant 0.000000e+00 : f32
        %137 = vector.broadcast %cst_59 : f32 to vector<1x128xf32>
        %138 = vector.broadcast %cst_60 : f32 to vector<1x128xf32>
        %139 = arith.select %136, %137, %138 : vector<1x128xi1>, vector<1x128xf32>
        %140 = vector.shape_cast %139 : vector<1x128xf32> to vector<1x1x128xf32>
        %cst_61 = arith.constant dense<0.000000e+00> : vector<1xf32>
        %141 = vector.multi_reduction <add>, %140, %cst_61 [1, 2] : vector<1x1x128xf32> to vector<1xf32>
        %142 = vector.shape_cast %141 : vector<1xf32> to vector<1x1x1xf32>
        %143 = vector.extract %142[0, 0, 0] : f32 from vector<1x1x1xf32>
        %144 = vector.broadcast %143 : f32 to vector<1x1xf32>
        %cst_62 = arith.constant 2.000000e+00 : f32
        %145 = vector.broadcast %cst_62 : f32 to vector<1x1xf32>
        %146 = arith.cmpf oge, %144, %145 : vector<1x1xf32>
        %147 = arith.select %146, %132, %arg6 : vector<1x1xi1>, vector<1x1xi32>
        %148 = arith.select %146, %arg7, %132 : vector<1x1xi1>, vector<1x1xi32>
        scf.yield %147, %148 : vector<1x1xi32>, vector<1x1xi32>
      }
      %c0_43 = arith.constant 0 : index
      %c0_44 = arith.constant 0 : index
      %94 = vector.load %arg4[%c0_43, %c0_44] : memref<1x128xf32, #tpu.memory_space<vmem>>, vector<1x128xf32>
      %95 = tpu.bitcast %94 : vector<1x128xf32> -> vector<1x128xi32>
      %96 = vector.broadcast %93#0 : vector<1x1xi32> to vector<1x128xi32>
      %97 = arith.cmpi sgt, %95, %96 : vector<1x128xi32>
      %cst_45 = arith.constant 0.000000e+00 : f32
      %98 = vector.broadcast %cst_45 : f32 to vector<1x128xf32>
      %99 = arith.select %97, %94, %98 : vector<1x128xi1>, vector<1x128xf32>
      %100 = vector.shape_cast %99 : vector<1x128xf32> to vector<1x1x128xf32>
      %cst_46 = arith.constant dense<0.000000e+00> : vector<1xf32>
      %101 = vector.multi_reduction <add>, %100, %cst_46 [1, 2] : vector<1x1x128xf32> to vector<1xf32>
      %102 = vector.shape_cast %101 : vector<1xf32> to vector<1x1x1xf32>
      %103 = vector.extract %102[0, 0, 0] : f32 from vector<1x1x1xf32>
      %104 = vector.broadcast %103 : f32 to vector<1x1xf32>
      %cst_47 = arith.constant 1.000000e+00 : f32
      %cst_48 = arith.constant 0.000000e+00 : f32
      %105 = vector.broadcast %cst_47 : f32 to vector<1x128xf32>
      %106 = vector.broadcast %cst_48 : f32 to vector<1x128xf32>
      %107 = arith.select %97, %105, %106 : vector<1x128xi1>, vector<1x128xf32>
      %108 = vector.shape_cast %107 : vector<1x128xf32> to vector<1x1x128xf32>
      %cst_49 = arith.constant dense<0.000000e+00> : vector<1xf32>
      %109 = vector.multi_reduction <add>, %108, %cst_49 [1, 2] : vector<1x1x128xf32> to vector<1xf32>
      %110 = vector.shape_cast %109 : vector<1xf32> to vector<1x1x1xf32>
      %111 = vector.extract %110[0, 0, 0] : f32 from vector<1x1x1xf32>
      %112 = vector.broadcast %111 : f32 to vector<1x1xf32>
      %113 = vector.broadcast %93#0 : vector<1x1xi32> to vector<1x128xi32>
      %114 = arith.cmpi eq, %95, %113 : vector<1x128xi32>
      %cst_50 = arith.constant -1.000000e+00 : f32
      %115 = vector.broadcast %cst_50 : f32 to vector<1x128xf32>
      %116 = arith.select %114, %94, %115 : vector<1x128xi1>, vector<1x128xf32>
      %117 = vector.shape_cast %116 : vector<1x128xf32> to vector<1x1x128xf32>
      %cst_51 = arith.constant dense<0xFF800000> : vector<1xf32>
      %118 = vector.multi_reduction <maximumf>, %117, %cst_51 [1, 2] : vector<1x1x128xf32> to vector<1xf32>
      %119 = vector.shape_cast %118 : vector<1xf32> to vector<1x1x1xf32>
      %120 = vector.extract %119[0, 0, 0] : f32 from vector<1x1x1xf32>
      %121 = vector.broadcast %120 : f32 to vector<1x1xf32>
      %cst_52 = arith.constant 2.000000e+00 : f32
      %122 = vector.broadcast %cst_52 : f32 to vector<1x1xf32>
      %123 = arith.subf %122, %112 : vector<1x1xf32>
      %124 = arith.mulf %123, %121 : vector<1x1xf32>
      %125 = arith.addf %104, %124 : vector<1x1xf32>
      %cst_53 = arith.constant 5.000000e-01 : f32
      %126 = vector.broadcast %cst_53 : f32 to vector<1x1xf32>
      %127 = arith.mulf %125, %126 : vector<1x1xf32>
      %c0_54 = arith.constant 0 : index
      %c0_55 = arith.constant 0 : index
      %128 = vector.load %arg3[%c0_54, %c0_55] : memref<1x1xf32, #tpu.memory_space<vmem>>, vector<1x1xf32>
      tpu.vector_store %arg3[%c0_54, %c0_55], %127 {strides = array<i32>} : memref<1x1xf32, #tpu.memory_space<vmem>>, vector<1x1xf32>,
    } else {
    }
    return
  }
  func.func @transform_0(%arg0: i32) -> (i32, i32, i32) {
    %c0_i32 = arith.constant 0 : i32
    %c0_i32_0 = arith.constant 0 : i32
    %c0_i32_1 = arith.constant 0 : i32
    return %c0_i32, %arg0, %c0_i32_0 : i32, i32, i32
  }
  func.func @transform_1(%arg0: i32) -> (i32, i32) {
    %c0_i32 = arith.constant 0 : i32
    %c0_i32_0 = arith.constant 0 : i32
    return %arg0, %c0_i32 : i32, i32
  }
  func.func @transform_2(%arg0: i32) -> (i32, i32) {
    %c0_i32 = arith.constant 0 : i32
    %c0_i32_0 = arith.constant 0 : i32
    %c0_i32_1 = arith.constant 0 : i32
    return %c0_i32, %c0_i32_0 : i32, i32
  }
}

</mosaic_0001>

<llo_original>
// kernel: tpu_custom_call.1
$region0: #{tpu_custom_call.1}
  #allocation0 [shape = 'u32[]', space=smem, size = 0x4, offset = 0x4, fixed_abs, tag = 'smem constant byte address 0x4 - core index']
  #allocation1 [shape = 'u32[144,128]{1,0:T(1,128)}', space=vmem, size = 0x12000, scoped, tag = 'internal scratch']
  #allocation2 [shape = 'f32[1,128]{1,0:T(1,128)}', space=vmem, size = 0x200, scoped, tag = 'scratch operand']
  %s0 = inlined_call_operand.hbm [shape: f32[5,1,128], index: 0, kind: input, shape index: {}]
  %s1 = inlined_call_operand.vmem [shape: s32[1,128], index: 1, kind: input, shape index: {}]
  %s2 = inlined_call_operand.hbm [shape: f32[1,1], index: 2, kind: output, shape index: {}]
  %s3 = sld [smem:[#allocation0]]
  $region33: #{tpu_custom_call.1} parent=0
    _
  %s5 = ssub.s32 1, %s3
  %s6 = scalar_select 0, %s5, %s3
  $region1: #{tpu_custom_call.1} parent=0
    #allocation3 [shape = 'u8[2560]{0}', space=vmem, size = 0xc00, scoped, tag = 'input window, operand 0, single buffered']
    #allocation4 [shape = 's32[1]{0}', space=sflag, size = 0x4, scoped, tag = 'scoped memory for tpu_custom_call.1']
    #allocation5 [shape = 's32[1]{0}', space=sflag, size = 0x4, scoped, tag = 'scoped memory for tpu_custom_call.1']
    #allocation6 [shape = 'u8[512]{0}', space=vmem, size = 0x400, scoped, tag = 'output window, operand 0, single buffered']
    %7 = vsyncpa [#allocation4], 0
    %8 = vsyncpa [#allocation5], 0
    // Predicated region
    $region2: #{tpu_custom_call.1} parent=1 // pred_check
      _
    $region3: #{tpu_custom_call.1} parent=1 // pred_check_branch
      %10 = sbr.rel (0) target = $region5
    $region4: #{tpu_custom_call.1} parent=1 // pred_region
      %s12 = ssub.s32 80, 80
      %13 = vsyncadd [#allocation4], %s12
      %s14 = sshll.u32 [#allocation3], 4
      %s15 = int_to_ptr.vmem [resolvable:$true] %s14
      %20 = dma.hbm_to_vmem [thread:$0]  %s0, 80, %s15, [#allocation4], 16, 16, 1
    $region5: #{tpu_custom_call.1} parent=1 // pred_fallthru
      _
    // Predicated region
    $region6: #{tpu_custom_call.1} parent=1 // pred_check
      _
    $region7: #{tpu_custom_call.1} parent=1 // pred_check_branch
      %22 = sbr.rel (0) target = $region9
    $region8: #{tpu_custom_call.1} parent=1 // pred_region
      _
    $region9: #{tpu_custom_call.1} parent=1 // pred_fallthru
      _
    // Predicated region
    $region10: #{tpu_custom_call.1} parent=1 // pred_check
      _
    $region11: #{tpu_custom_call.1} parent=1 // pred_check_branch
      %24 = sbr.rel (0) target = $region13
    $region12: #{tpu_custom_call.1} parent=1 // pred_region
      %25 = dma.done [#allocation4], 80
    $region13: #{tpu_custom_call.1} parent=1 // pred_fallthru
      _
    %v26 = vld [vmem:[%s1] sm:$0x1]
    %v27 = vld [vmem:[#allocation3] sm:$0x1]
    %s28 = scalar_lea.vmem [#allocation3], 1
    %v29 = vld [vmem:[%s28] sm:$0x1]
    %v30 = vmax.f32 %v27, %v29
    %s31 = scalar_lea.vmem [#allocation3], 2
    %v32 = vld [vmem:[%s31] sm:$0x1]
    %v33 = vmax.f32 %v30, %v32
    %s34 = scalar_lea.vmem [#allocation3], 3
    %v35 = vld [vmem:[%s34] sm:$0x1]
    %v36 = vmax.f32 %v33, %v35
    %s37 = scalar_lea.vmem [#allocation3], 4
    %v38 = vld [vmem:[%s37] sm:$0x1]
    %v39 = vmax.f32 %v36, %v38
    %v40 = vsub.f32 %v27, %v39
    %v41 = vmul.f32 %v40, 1.442695
    %v42 = vpow.pop %v41
    %v43 = vadd.f32 %v42, 0.0
    %vm44 = vcmp.eq.s32.totalorder %v26, 0
    %v45 = vsel %vm44, %v40, 0.0
    %v46 = vadd.f32 %v45, 0.0
    %v47 = vsub.f32 %v29, %v39
    %v48 = vmul.f32 %v47, 1.442695
    %v49 = vpow.pop %v48
    %v50 = vadd.f32 %v43, %v49
    %vm51 = vcmp.eq.s32.totalorder %v26, 1
    %v52 = vsel %vm51, %v47, 0.0
    %v53 = vadd.f32 %v46, %v52
    %v54 = vsub.f32 %v32, %v39
    %v55 = vmul.f32 %v54, 1.442695
    %v56 = vpow.pop %v55
    %v57 = vadd.f32 %v50, %v56
    %vm58 = vcmp.eq.s32.totalorder %v26, 2
    %v59 = vsel %vm58, %v54, 0.0
    %v60 = vadd.f32 %v53, %v59
    %v61 = vsub.f32 %v35, %v39
    %v62 = vmul.f32 %v61, 1.442695
    %v63 = vpow.pop %v62
    %v64 = vadd.f32 %v57, %v63
    %vm65 = vcmp.eq.s32.totalorder %v26, 3
    %v66 = vsel %vm65, %v61, 0.0
    %v67 = vadd.f32 %v60, %v66
    %v68 = vsub.f32 %v38, %v39
    %v69 = vmul.f32 %v68, 1.442695
    %v70 = vpow.pop %v69
    %v71 = vadd.f32 %v64, %v70
    %vm72 = vcmp.eq.s32.totalorder %v26, 4
    %v73 = vsel %vm72, %v68, 0.0
    %v74 = vadd.f32 %v67, %v73
    %v75 = vlog2.pop %v71
    %v76 = vmul.f32 %v75, 0.6931472
    %v77 = vsub.f32 %v76, %v74
    %v78 = vmax.f32 %v77, 0.0
    %v79 = vlaneseq
    %v80 = vshrl.u32 %v79, 7
    %v81 = vlaneseq
    %v82 = vand.u32 %v81, 127
    %v83 = vstv 0
    %v84 = vadd.s32 %v83, %v80
    %v85 = vmul.u32 %v84, 128
    %v86 = vadd.s32 %v85, %v82
    %vm87 = vcmp.lt.s32.totalorder %v86, 8
    %v88 = vsel %vm87, %v78, -1.0
    %89 = vst [vmem:[#allocation2] sm:$0x1] %v88
    %p90 = scmp.eq.s32.totalorder 0, 0
    // Predicated region
    $region14: #{tpu_custom_call.1} parent=1 // pred_check
      %p91 = pneg %p90
    $region15: #{tpu_custom_call.1} parent=1 // pred_check_branch
      %93 = sbr.rel (%p91) target = $region17
    $region16: #{tpu_custom_call.1} parent=1 // pred_region
      loop: start=0, step=1, limit=32
      $region18: #{tpu_custom_call.1} parent=16 // loop_pre_header
        _
      $region19: #{tpu_custom_call.1} parent=16 // loop_header
        %s95 = sphi 0, %s99
        %p96 = scmp.ge.s32.totalorder %s95, 32
        %v100 = vphi 0, %v122
        %v101 = vphi 2139095040, %v123
      $region20: #{tpu_custom_call.1} parent=16 // loop_header_branch
        %98 = sbr.rel (%p96) target = $region24
      $region21: #{tpu_custom_call.1} parent=16 // loop_body
        %v102 = vsub.s32 %v101, %v100
        %v103 = vshra.s32 %v102, 1
        %v104 = vadd.s32 %v100, %v103
        %v105 = vld [vmem:[#allocation2] sm:$0x1]
        %vm107 = vcmp.ge.s32.totalorder %v105, %v104
        %v108 = vsel %vm107, 1.0, 0.0
        %vm109 = vcmask 1040384
        %v110 = vsel %vm109, %v108, 0.0
        %111 = vadd.xlane.f32.xlu0 %v110
        %v112 = vpop.xlane.xlu0 %111
        %v113 = vrot.slane %v112, 4
        %v114 = vadd.f32 %v112, %v113
        %v115 = vrot.slane %v114, 2
        %v116 = vadd.f32 %v114, %v115
        %v117 = vrot.slane %v116, 1
        %v118 = vadd.f32 %v116, %v117
        %s119 = vtos %v118
        %v120 = vstv %s119
        %vm121 = vcmp.ge.f32.partialorder %v120, 2.0
        %v122 = vsel %vm121, %v104, %v100
        %v123 = vsel %vm121, %v101, %v104
      $region22: #{tpu_custom_call.1} parent=16 // loop_footer
        %s99 = sadd.s32 1, %s95
      $region23: #{tpu_custom_call.1} parent=16 // loop_footer_branch
        %94 = sbr.rel target = $region19
      $region24: #{tpu_custom_call.1} parent=16 // loop_exit
        _
      %v124 = vld [vmem:[#allocation2] sm:$0x1]
      %vm126 = vcmp.gt.s32.totalorder %v124, %v100
      %v127 = vsel %vm126, %v124, 0.0
      %vm128 = vcmask 1040384
      %v129 = vsel %vm128, %v127, 0.0
      %130 = vadd.xlane.f32.xlu0 %v129
      %v131 = vpop.xlane.xlu0 %130
      %v132 = vrot.slane %v131, 4
      %v133 = vadd.f32 %v131, %v132
      %v134 = vrot.slane %v133, 2
      %v135 = vadd.f32 %v133, %v134
      %v136 = vrot.slane %v135, 1
      %v137 = vadd.f32 %v135, %v136
      %s138 = vtos %v137
      %v139 = vstv %s138
      %v140 = vsel %vm126, 1.0, 0.0
      %v141 = vsel %vm128, %v140, 0.0
      %142 = vadd.xlane.f32.xlu0 %v141
      %v143 = vpop.xlane.xlu0 %142
      %v144 = vrot.slane %v143, 4
      %v145 = vadd.f32 %v143, %v144
      %v146 = vrot.slane %v145, 2
      %v147 = vadd.f32 %v145, %v146
      %v148 = vrot.slane %v147, 1
      %v149 = vadd.f32 %v147, %v148
      %s150 = vtos %v149
      %v151 = vstv %s150
      %vm152 = vcmp.eq.s32.totalorder %v124, %v100
      %v153 = vsel %vm152, %v124, -1.0
      %v154 = vsel %vm128, %v153, -inf
      %155 = vmax.xlane.f32.xlu0 %v154
      %v156 = vpop.xlane.xlu0 %155
      %v157 = vrot.slane %v156, 4
      %v158 = vmax.f32 %v156, %v157
      %v159 = vrot.slane %v158, 2
      %v160 = vmax.f32 %v158, %v159
      %v161 = vrot.slane %v160, 1
      %v162 = vmax.f32 %v160, %v161
      %s163 = vtos %v162
      %v164 = vstv %s163
      %v165 = vsub.f32 2.0, %v151
      %v166 = vmul.f32 %v165, %v164
      %v167 = vadd.f32 %v139, %v166
      %v168 = vmul.f32 %v167, 0.5
      %vm169 = vcmask 0
      %170 = vst.msk [vmem:[#allocation6] sm:$0x1] %vm169, %v168
    $region17: #{tpu_custom_call.1} parent=1 // pred_fallthru
      _
    // Predicated region
    $region25: #{tpu_custom_call.1} parent=1 // pred_check
      _
    $region26: #{tpu_custom_call.1} parent=1 // pred_check_branch
      %172 = sbr.rel (0) target = $region28
    $region27: #{tpu_custom_call.1} parent=1 // pred_region
      %s174 = ssub.s32 16, 16
      %175 = vsyncadd [#allocation5], %s174
      %s177 = sshll.u32 [#allocation6], 4
      %s178 = int_to_ptr.vmem [resolvable:$true] %s177
      %180 = dma.vmem_to_hbm [thread:$0]  %s178, 16, %s2, [#allocation5]
    $region28: #{tpu_custom_call.1} parent=1 // pred_fallthru
      _
    // Predicated region
    $region29: #{tpu_custom_call.1} parent=1 // pred_check
      _
    $region30: #{tpu_custom_call.1} parent=1 // pred_check_branch
      %182 = sbr.rel (0) target = $region32
    $region31: #{tpu_custom_call.1} parent=1 // pred_region
      %183 = dma.done [#allocation5], 16
    $region32: #{tpu_custom_call.1} parent=1 // pred_fallthru
      _
    %184 = vsyncpa [#allocation4], 1
    %185 = vsyncpa [#allocation5], 1

</llo_original>
